<compile_context>
chip_gen: v7x
topology: tpu7x:2x2x1
jax: 0.10.0
libtpu: 0.0.40
codegen_flags: <defaults>
</compile_context>

<pallas_src>
import functools
import math

import jax
import jax.numpy as jnp
from jax.experimental import pallas as pl
from jax.experimental.pallas import tpu as pltpu


def _round_up(a, b):
    return (a + b - 1) // b * b


def _label_smoothing_kernel(x_ref, tgt_ref, out_ref, *, n_rows, size,
                            padding_idx, smooth_val, confidence,
                            tile_n, tile_v):
    """One (tile_n, tile_v) tile; accumulates sum(true_dist * x) for this
    N-tile into a lane-dense (1, sub, tile_v) resident output block across the
    V (innermost, reduction) grid axis."""
    i = pl.program_id(0)          # N-tile index ("parallel")
    k = pl.program_id(1)          # V-tile index (reduction, "arbitrary")

    @pl.when(k == 0)
    def _init():
        out_ref[...] = jnp.zeros_like(out_ref)

    x = x_ref[...].astype(jnp.float32)            # (tn, tv), upcast per tile
    tgt = tgt_ref[...]                            # (tn, 1) int32 targets
    tn, tv = x.shape
    off = k * tile_v                              # global column offset

    # Per-row validity (tn, 1): real row and target != padding_idx.
    row = i * tile_n + jax.lax.broadcasted_iota(jnp.int32, (tn, 1), 0)
    row_ok = (tgt != padding_idx) & (row < n_rows)

    # Per-column validity (1, tv): not the padding column and inside the real
    # vocab (edge tiles read garbage past `size` because nothing is padded).
    lane = jax.lax.broadcasted_iota(jnp.int32, (1, tv), 1)
    col_ok = (lane != padding_idx - off) & (lane < size - off)

    # Two-valued smoothed distribution -> one compare + one select.
    is_tgt = jax.lax.broadcasted_iota(jnp.int32, (tn, tv), 1) == (tgt - off)
    w = jnp.where(is_tgt, confidence, smooth_val)

    # Select (not multiply-by-zero) so garbage x in out-of-bounds regions of
    # edge blocks (possible NaN/Inf) cannot poison the sum.
    contrib = jnp.where(col_ok & row_ok, w * x, 0.0)

    # Sublane-block partial reduce: pure VPU adds, no per-step XLU reduce.
    sub = out_ref.shape[1]
    part = contrib[0:sub, :]
    for r in range(sub, tn, sub):
        part = part + contrib[r:r + sub, :]
    out_ref[...] += part[None, :, :]


def label_smoothing_loss(x, target, *, size, padding_idx, smoothing,
                         tile_n=512, tile_v=2048):
    """Forward pass of LabelSmoothing. Returns a scalar float32 loss."""
    assert x.ndim == 2 and x.shape[1] == size, (
        f"The 1st size of input 'x' {x.shape[1]} should be equal to the "
        f"predefined size {size}")
    n, v = x.shape

    confidence = 1.0 - smoothing
    smooth_val = smoothing / (size - 2)
    # Guarded so smoothing == 0.0 or 1.0 stays finite (0*log(0) -> 0).
    log_conf = math.log(confidence) if confidence > 0.0 else 0.0
    log_smooth = math.log(smooth_val) if smooth_val > 0.0 else 0.0

    # ----- tile-size selection (no wrapper-side padding of x) ---------------
    tile_n = max(8, (tile_n // 8) * 8)
    tile_v = max(128, (tile_v // 128) * 128)
    if n <= 8:
        tn = n                                    # single tiny block (full dim)
    else:
        tn = min(tile_n, _round_up(n, 8))
        if pl.cdiv(n, tn) == 1:
            # Split the batch so the "parallel" axis has >= 2 blocks and both
            # v7x TensorCores get work.
            tn = _round_up(pl.cdiv(n, 2), 8)
    tv = v if v <= tile_v else tile_v
    grid_n = pl.cdiv(n, tn)
    grid_v = pl.cdiv(v, tv)
    acc_rows = 8 if tn % 8 == 0 else tn           # sublane rows of the accumulator

    tgt2d = target.astype(jnp.int32).reshape(n, 1)

    kernel = functools.partial(
        _label_smoothing_kernel,
        n_rows=n, size=size, padding_idx=padding_idx,
        smooth_val=smooth_val, confidence=confidence,
        tile_n=tn, tile_v=tv)

    partials = pl.pallas_call(
        kernel,
        out_shape=jax.ShapeDtypeStruct((grid_n, acc_rows, tv), jnp.float32),
        grid=(grid_n, grid_v),
        in_specs=[
            pl.BlockSpec((tn, tv), lambda i, k: (i, k)),   # x, native dtype
            pl.BlockSpec((tn, 1), lambda i, k: (i, 0)),    # targets, resident over V
        ],
        # Lane-dense accumulator block, resident across the V reduction axis.
        out_specs=pl.BlockSpec((1, acc_rows, tv), lambda i, k: (i, 0, 0)),
        compiler_params=pltpu.CompilerParams(
            dimension_semantics=("parallel", "arbitrary"),
            vmem_limit_bytes=48 * 1024 * 1024),
    )(x, tgt2d)

    # sum(td * log(td)) over the nonzero entries is a per-row constant that
    # depends only on whether the row's target is the padding index.
    n_valid = jnp.sum(target != padding_idx).astype(jnp.float32)
    row_const = confidence * log_conf + (size - 2) * smooth_val * log_smooth
    s = jnp.sum(partials)                          # sum(td * x) over valid positions
    # KLDivLoss(reduction='batchmean'): divide by the global batch size.
    return (n_valid * row_const - s) / jnp.float32(n)


def _reference_loss(x, target, *, size, padding_idx, smoothing):
    """Pure-JAX reference mirroring the PyTorch forward."""
    n, v = x.shape
    x = x.astype(jnp.float32)
    confidence = 1.0 - smoothing
    td = jnp.full((n, v), smoothing / (size - 2), jnp.float32)
    td = td.at[jnp.arange(n), target].set(confidence)
    td = td.at[:, padding_idx].set(0.0)
    td = jnp.where((target == padding_idx)[:, None], 0.0, td)
    pos = td > 0.0
    kl = jnp.where(pos, td * (jnp.log(jnp.where(pos, td, 1.0)) - x), 0.0)
    return jnp.sum(kl) / n


if __name__ == "__main__":
    key = jax.random.PRNGKey(0)
    k1, k2, k3, k4 = jax.random.split(key, 4)

    # --- Test 1: classic config LabelSmoothing(size=5, padding_idx=0, smoothing=0.4)
    SIZE, PAD, SMOOTH, N = 5, 0, 0.4, 8
    logits = jax.random.normal(k1, (N, SIZE), dtype=jnp.float32)
    x = jax.nn.log_softmax(logits, axis=-1)
    target = jax.random.randint(k2, (N,), 0, SIZE, dtype=jnp.int32)
    target = target.at[3].set(PAD)                 # exercise the padding-row mask

    loss = jax.block_until_ready(
        label_smoothing_loss(x, target, size=SIZE, padding_idx=PAD,
                             smoothing=SMOOTH))
    ref = _reference_loss(x, target, size=SIZE, padding_idx=PAD, smoothing=SMOOTH)
    assert jnp.allclose(loss, ref, rtol=1e-5, atol=1e-5), (loss, ref)

    # --- Test 2: multi-tile grid with ragged batch AND ragged vocab edges
    # (N=13 not a multiple of tile_n=8, V=300 not a multiple of tile_v=128),
    # all handled by in-kernel masking — no padding copies.
    SIZE2, PAD2, SMOOTH2, N2 = 300, 0, 0.1, 13
    logits2 = jax.random.normal(k3, (N2, SIZE2), dtype=jnp.float32)
    x2 = jax.nn.log_softmax(logits2, axis=-1)
    target2 = jax.random.randint(k4, (N2,), 0, SIZE2, dtype=jnp.int32)
    target2 = target2.at[0].set(PAD2)

    loss2 = jax.block_until_ready(
        label_smoothing_loss(x2, target2, size=SIZE2, padding_idx=PAD2,
                             smoothing=SMOOTH2, tile_n=8, tile_v=128))
    ref2 = _reference_loss(x2, target2, size=SIZE2, padding_idx=PAD2,
                           smoothing=SMOOTH2)
    assert jnp.allclose(loss2, ref2, rtol=1e-5, atol=1e-5), (loss2, ref2)

    print("KERNEL_OK")
</pallas_src>

<mosaic_0001>
module attributes {stable_mosaic.version = 11 : i64} {
  func.func @_label_smoothing_kernel(%arg0: i32, %arg1: i32, %arg2: memref<8x5xf32, #tpu.memory_space<vmem>>, %arg3: memref<8x1xi32, #tpu.memory_space<vmem>>, %arg4: memref<1x8x5xf32, #tpu.memory_space<vmem>>) attributes {dimension_semantics = [#tpu.dimension_semantics<parallel>, #tpu.dimension_semantics<arbitrary>], iteration_bounds = array<i64: 1, 1>, scalar_prefetch = 0 : i64, scratch_operands = 0 : i64, tpu.core_type = #tpu.core_type<tc>, window_params = [{transform_indices = @transform_0, window_bounds = array<i64: 8, 5>}, {transform_indices = @transform_1, window_bounds = array<i64: 8, 1>}, {transform_indices = @transform_2, window_bounds = array<i64: 1, 8, 5>}]} {
    %c0_i32 = arith.constant 0 : i32
    %0 = arith.cmpi eq, %arg1, %c0_i32 : i32
    %1 = arith.extui %0 : i1 to i32
    %c0_i32_0 = arith.constant 0 : i32
    %2 = arith.cmpi ne, %1, %c0_i32_0 : i32
    scf.if %2 {
      %cst_16 = arith.constant 0.000000e+00 : f32
      %41 = vector.broadcast %cst_16 : f32 to vector<1x8x5xf32>
      %c0_17 = arith.constant 0 : index
      %c0_18 = arith.constant 0 : index
      %c0_19 = arith.constant 0 : index
      %42 = vector.load %arg4[%c0_17, %c0_18, %c0_19] : memref<1x8x5xf32, #tpu.memory_space<vmem>>, vector<1x8x5xf32>
      tpu.vector_store %arg4[%c0_17, %c0_18, %c0_19], %41 {strides = array<i32>} : memref<1x8x5xf32, #tpu.memory_space<vmem>>, vector<1x8x5xf32>,
    } else {
    }
    %c0 = arith.constant 0 : index
    %c0_1 = arith.constant 0 : index
    %3 = vector.load %arg2[%c0, %c0_1] : memref<8x5xf32, #tpu.memory_space<vmem>>, vector<8x5xf32>
    %c0_2 = arith.constant 0 : index
    %c0_3 = arith.constant 0 : index
    %4 = vector.load %arg3[%c0_2, %c0_3] : memref<8x1xi32, #tpu.memory_space<vmem>>, vector<8x1xi32>
    %c5_i32 = arith.constant 5 : i32
    %5 = arith.muli %arg1, %c5_i32 : i32
    %c8_i32 = arith.constant 8 : i32
    %6 = arith.muli %arg0, %c8_i32 : i32
    %7 = tpu.iota {dimensions = array<i32: 0>} : vector<8x1xi32>
    %8 = vector.broadcast %6 : i32 to vector<8x1xi32>
    %9 = arith.addi %8, %7 : vector<8x1xi32>
    %c0_i32_4 = arith.constant 0 : i32
    %10 = vector.broadcast %c0_i32_4 : i32 to vector<8x1xi32>
    %11 = arith.cmpi ne, %4, %10 : vector<8x1xi32>
    %c8_i32_5 = arith.constant 8 : i32
    %12 = vector.broadcast %c8_i32_5 : i32 to vector<8x1xi32>
    %13 = arith.cmpi slt, %9, %12 : vector<8x1xi32>
    %14 = arith.andi %11, %13 : vector<8x1xi1>
    %15 = tpu.iota {dimensions = array<i32: 1>} : vector<1x5xi32>
    %c0_i32_6 = arith.constant 0 : i32
    %16 = arith.subi %c0_i32_6, %5 : i32
    %17 = vector.broadcast %16 : i32 to vector<1x5xi32>
    %18 = arith.cmpi ne, %15, %17 : vector<1x5xi32>
    %c5_i32_7 = arith.constant 5 : i32
    %19 = arith.subi %c5_i32_7, %5 : i32
    %20 = vector.broadcast %19 : i32 to vector<1x5xi32>
    %21 = arith.cmpi slt, %15, %20 : vector<1x5xi32>
    %22 = arith.andi %18, %21 : vector<1x5xi1>
    %23 = tpu.iota {dimensions = array<i32: 1>} : vector<8x5xi32>
    %24 = vector.broadcast %5 : i32 to vector<8x1xi32>
    %25 = arith.subi %4, %24 : vector<8x1xi32>
    %26 = vector.broadcast %25 : vector<8x1xi32> to vector<8x5xi32>
    %27 = arith.cmpi eq, %23, %26 : vector<8x5xi32>
    %cst = arith.constant 6.000000e-01 : f32
    %cst_8 = arith.constant 0.13333334 : f32
    %28 = vector.broadcast %cst : f32 to vector<8x5xf32>
    %29 = vector.broadcast %cst_8 : f32 to vector<8x5xf32>
    %30 = arith.select %27, %28, %29 : vector<8x5xi1>, vector<8x5xf32>
    %31 = vector.broadcast %22 : vector<1x5xi1> to vector<8x5xi1>
    %32 = vector.broadcast %14 : vector<8x1xi1> to vector<8x5xi1>
    %33 = arith.andi %31, %32 : vector<8x5xi1>
    %34 = arith.mulf %30, %3 : vector<8x5xf32>
    %cst_9 = arith.constant 0.000000e+00 : f32
    %35 = vector.broadcast %cst_9 : f32 to vector<8x5xf32>
    %36 = arith.select %33, %34, %35 : vector<8x5xi1>, vector<8x5xf32>
    %c0_10 = arith.constant 0 : index
    %c0_11 = arith.constant 0 : index
    %c0_12 = arith.constant 0 : index
    %37 = vector.load %arg4[%c0_10, %c0_11, %c0_12] : memref<1x8x5xf32, #tpu.memory_space<vmem>>, vector<1x8x5xf32>
    %38 = vector.shape_cast %36 : vector<8x5xf32> to vector<1x8x5xf32>
    %39 = arith.addf %37, %38 : vector<1x8x5xf32>
    %c0_13 = arith.constant 0 : index
    %c0_14 = arith.constant 0 : index
    %c0_15 = arith.constant 0 : index
    %40 = vector.load %arg4[%c0_13, %c0_14, %c0_15] : memref<1x8x5xf32, #tpu.memory_space<vmem>>, vector<1x8x5xf32>
    tpu.vector_store %arg4[%c0_13, %c0_14, %c0_15], %39 {strides = array<i32>} : memref<1x8x5xf32, #tpu.memory_space<vmem>>, vector<1x8x5xf32>,
    return
  }
  func.func @transform_0(%arg0: i32, %arg1: i32) -> (i32, i32) {
    %c0_i32 = arith.constant 0 : i32
    return %arg0, %arg1 : i32, i32
  }
  func.func @transform_1(%arg0: i32, %arg1: i32) -> (i32, i32) {
    %c0_i32 = arith.constant 0 : i32
    %c0_i32_0 = arith.constant 0 : i32
    return %arg0, %c0_i32 : i32, i32
  }
  func.func @transform_2(%arg0: i32, %arg1: i32) -> (i32, i32, i32) {
    %c0_i32 = arith.constant 0 : i32
    %c0_i32_0 = arith.constant 0 : i32
    %c0_i32_1 = arith.constant 0 : i32
    return %arg0, %c0_i32, %c0_i32_0 : i32, i32, i32
  }
}

</mosaic_0001>

<llo_original>
// kernel: tpu_custom_call.1
$region0: #{tpu_custom_call.1}
  #allocation0 [shape = 'u32[]', space=smem, size = 0x4, offset = 0x4, fixed_abs, tag = 'smem constant byte address 0x4 - core index']
  #allocation1 [shape = 'u32[144,128]{1,0:T(1,128)}', space=vmem, size = 0x12000, scoped, tag = 'internal scratch']
  %s0 = inlined_call_operand.vmem [shape: f32[8,5], index: 0, kind: input, shape index: {}]
  %s1 = inlined_call_operand.vmem [shape: s32[8,1], index: 1, kind: input, shape index: {}]
  %s2 = inlined_call_operand.vmem [shape: f32[1,8,5], index: 2, kind: output, shape index: {}]
  %s3 = sld [smem:[#allocation0]]
  $region22: #{tpu_custom_call.1} parent=0
    _
  %s5 = ssub.s32 1, %s3
  %s6 = scalar_select 0, %s5, %s3
  // Predicated region
  $region2: #{tpu_custom_call.1} parent=0 // pred_check
    _
  $region3: #{tpu_custom_call.1} parent=0 // pred_check_branch
    %8 = sbr.rel (0) target = $region5
  $region4: #{tpu_custom_call.1} parent=0 // pred_region
    _
  $region5: #{tpu_custom_call.1} parent=0 // pred_fallthru
    _
  // Predicated region
  $region6: #{tpu_custom_call.1} parent=0 // pred_check
    _
  $region7: #{tpu_custom_call.1} parent=0 // pred_check_branch
    %10 = sbr.rel (0) target = $region9
  $region8: #{tpu_custom_call.1} parent=0 // pred_region
    _
  $region9: #{tpu_custom_call.1} parent=0 // pred_fallthru
    _
  %p11 = scmp.eq.s32.totalorder 0, 0
  // Predicated region
  $region10: #{tpu_custom_call.1} parent=0 // pred_check
    %p12 = pneg %p11
  $region11: #{tpu_custom_call.1} parent=0 // pred_check_branch
    %14 = sbr.rel (%p12) target = $region13
  $region12: #{tpu_custom_call.1} parent=0 // pred_region
    %vm15 = vcmask 39936
    %16 = vst.msk [vmem:[%s2] sm:$0xff] %vm15, 0.0
  $region13: #{tpu_custom_call.1} parent=0 // pred_fallthru
    _
  %v17 = vld [vmem:[%s0] sm:$0xff]
  %v18 = vld [vmem:[%s1] sm:$0xff]
  %s19 = smul.u32 0, 5
  %s20 = smul.u32 0, 8
  %v21 = vlaneseq
  %v22 = vshrl.u32 %v21, 7
  %v23 = vstv %s20
  %v24 = vadd.s32 %v23, %v22
  %vm25 = vcmp.ne.s32.totalorder %v18, 0
  %vm26 = vcmp.lt.s32.totalorder %v24, 8
  %vm27 = vmand %vm25, %vm26
  %v28 = vlaneseq
  %v29 = vand.u32 %v28, 127
  %s30 = ssub.s32 0, %s19
  %v31 = vstv %s30
  %vm32 = vcmp.ne.s32.totalorder %v29, %v31
  %s33 = ssub.s32 5, %s19
  %v34 = vstv %s33
  %vm35 = vcmp.lt.s32.totalorder %v29, %v34
  %vm36 = vmand %vm32, %vm35
  %v37 = vstv %s19
  %v38 = vsub.s32 %v18, %v37
  %39 = vset.pattern.permute.xlu0 0
  %40 = vperm.xlu0 %39, %v38
  %v41 = vpop.permute.xlu0 %40
  %vm42 = vcmp.eq.s32.totalorder %v29, %v41
  %v43 = vsel %vm42, 0.6, 0.13333334
  %v44 = vsel %vm36, 1, 0
  %vm45 = vcmp.eq.s32.totalorder %v44, 1
  %v46 = vsel %vm27, 1, 0
  %47 = vset.pattern.permute.xlu0 0
  %48 = vperm.xlu0 %47, %v46
  %v49 = vpop.permute.xlu0 %48
  %vm50 = vcmp.eq.s32.totalorder %v49, 1
  %vm51 = vmand %vm45, %vm50
  %v52 = vmul.f32 %v43, %v17
  %v53 = vsel %vm51, %v52, 0.0
  %v54 = vld [vmem:[%s2] sm:$0xff]
  %v55 = vadd.f32 %v54, %v53
  %vm56 = vcmask 39936
  %57 = vst.msk [vmem:[%s2] sm:$0xff] %vm56, %v55
  // Predicated region
  $region14: #{tpu_custom_call.1} parent=0 // pred_check
    _
  $region15: #{tpu_custom_call.1} parent=0 // pred_check_branch
    %59 = sbr.rel (0) target = $region17
  $region16: #{tpu_custom_call.1} parent=0 // pred_region
    _
  $region17: #{tpu_custom_call.1} parent=0 // pred_fallthru
    _
  // Predicated region
  $region18: #{tpu_custom_call.1} parent=0 // pred_check
    _
  $region19: #{tpu_custom_call.1} parent=0 // pred_check_branch
    %61 = sbr.rel (0) target = $region21
  $region20: #{tpu_custom_call.1} parent=0 // pred_region
    _
  $region21: #{tpu_custom_call.1} parent=0 // pred_fallthru
    _

</llo_original>
